<compile_context>
chip_gen: v7x
topology: tpu7x:2x2x1
jax: 0.10.0
libtpu: 0.0.40
codegen_flags: <defaults>
</compile_context>

<pallas_src>
import math

import jax
import jax.numpy as jnp
import numpy as np
from jax.experimental import pallas as pl
from jax.experimental.pallas import tpu as pltpu


def _pe_add_kernel(pe_ref, x_ref, o_ref):
    """pe_ref: (R, 1) f32 per-row constant; x_ref/o_ref: (R, TS) tiles."""
    x = x_ref[...].astype(jnp.float32)
    o_ref[...] = (x + pe_ref[...]).astype(o_ref.dtype)


def _build_pe_channels(d_model):
    """Per-channel constant: pe[2m] = sin(m*div[m]), pe[2m+1] = cos(m*div[m])."""
    half = d_model // 2
    pos = jnp.arange(half, dtype=jnp.float32)
    div_term = jnp.exp(
        jnp.arange(0, d_model, 2, dtype=jnp.float32)
        * (-math.log(10000.0) / d_model)
    )
    angle = pos * div_term
    return jnp.stack([jnp.sin(angle), jnp.cos(angle)], axis=-1).reshape(d_model)


def _choose_tiles(rows, S, itemsize, target_tile_bytes=2 << 20):
    """Pick (R, TS) so the x tile is ~target bytes, lane-dense, (8,128)-legal."""
    # Lane (last) dim: multiple of 128 (unmasked vst) unless S itself is small.
    if S < 128:
        ts = S                                  # full dim -> always legal
    else:
        ts = min((S // 128) * 128, 2048)        # multiple of 128, <= S
    # Row (sublane) dim: multiple of 8 (or full rows), fill the byte budget.
    budget_r = max(8, ((target_tile_bytes // (ts * itemsize)) // 8) * 8)
    r = rows if budget_r >= rows else budget_r
    return r, ts


def positional_encoding_3d(x):
    """x: (B, C, D1, D2, D3) float array with C == d_model. Returns x + pe."""
    B, C, D1, D2, D3 = x.shape
    if C % 2 != 0:
        # The PyTorch reference itself fails for odd d_model (0::2 / 1::2 mismatch).
        raise ValueError("d_model (channel dim) must be even")
    rows = B * C
    S = D1 * D2 * D3

    x2 = x.reshape(rows, S)  # contiguous view, no data movement
    pe = jnp.broadcast_to(_build_pe_channels(C)[None, :], (B, C)).reshape(rows, 1)

    R, TS = _choose_tiles(rows, S, x.dtype.itemsize)
    grid = (pl.cdiv(rows, R), pl.cdiv(S, TS))

    out = pl.pallas_call(
        _pe_add_kernel,
        out_shape=jax.ShapeDtypeStruct((rows, S), x.dtype),
        grid=grid,
        in_specs=[
            # pe: spatial-invariant -> re-fetched only when the row block changes.
            pl.BlockSpec((R, 1), lambda r, s: (r, 0)),
            pl.BlockSpec((R, TS), lambda r, s: (r, s)),
        ],
        out_specs=pl.BlockSpec((R, TS), lambda r, s: (r, s)),
        input_output_aliases={1: 0},  # write result in place of the input slab
        compiler_params=pltpu.CompilerParams(
            dimension_semantics=("parallel", "parallel")
        ),
    )(pe, x2)

    return out.reshape(B, C, D1, D2, D3)


def _reference_numpy(x):
    """Pure-numpy replica of the PyTorch 5-D forward for validation."""
    B, C, D1, D2, D3 = x.shape
    d_model = C
    pos = np.arange(d_model // 2, dtype=np.float32)
    div_term = np.exp(
        np.arange(0, d_model, 2, dtype=np.float32) * (-math.log(10000.0) / d_model)
    )
    pe_vec = np.zeros((d_model,), dtype=np.float32)
    pe_vec[0::2] = np.sin(pos * div_term)
    pe_vec[1::2] = np.cos(pos * div_term)
    return x + pe_vec.reshape(1, d_model, 1, 1, 1)


if __name__ == "__main__":
    key = jax.random.PRNGKey(0)

    # Case 1: small aligned-ish volume (S < 128 -> full-lane block).
    x1 = jax.random.normal(key, (2, 8, 4, 4, 4), dtype=jnp.float32)
    x1_np = np.asarray(x1)  # snapshot before the (aliasing) kernel call
    out1 = jax.block_until_ready(positional_encoding_3d(x1))
    np.testing.assert_allclose(
        np.asarray(out1), _reference_numpy(x1_np), rtol=1e-5, atol=1e-5
    )

    # Case 2: ragged spatial extent (S = 5*6*7 = 210, TS = 128 -> ragged last block).
    key2 = jax.random.PRNGKey(0)
    x2 = jax.random.normal(key2, (2, 6, 5, 6, 7), dtype=jnp.float32)
    x2_np = np.asarray(x2)
    out2 = jax.block_until_ready(positional_encoding_3d(x2))
    np.testing.assert_allclose(
        np.asarray(out2), _reference_numpy(x2_np), rtol=1e-5, atol=1e-5
    )

    print("KERNEL_OK")
</pallas_src>

<mosaic_0001>
module attributes {stable_mosaic.version = 11 : i64} {
  func.func @_pe_add_kernel(%arg0: i32, %arg1: i32, %arg2: memref<16x1xf32, #tpu.memory_space<vmem>>, %arg3: memref<16x64xf32, #tpu.memory_space<vmem>>, %arg4: memref<16x64xf32, #tpu.memory_space<vmem>>) attributes {dimension_semantics = [#tpu.dimension_semantics<parallel>, #tpu.dimension_semantics<parallel>], iteration_bounds = array<i64: 1, 1>, scalar_prefetch = 0 : i64, scratch_operands = 0 : i64, tpu.core_type = #tpu.core_type<tc>, window_params = [{transform_indices = @transform_0, window_bounds = array<i64: 16, 1>}, {transform_indices = @transform_1, window_bounds = array<i64: 16, 64>}, {transform_indices = @transform_2, window_bounds = array<i64: 16, 64>}]} {
    %c0 = arith.constant 0 : index
    %c0_0 = arith.constant 0 : index
    %0 = vector.load %arg3[%c0, %c0_0] : memref<16x64xf32, #tpu.memory_space<vmem>>, vector<16x64xf32>
    %c0_1 = arith.constant 0 : index
    %c0_2 = arith.constant 0 : index
    %1 = vector.load %arg2[%c0_1, %c0_2] : memref<16x1xf32, #tpu.memory_space<vmem>>, vector<16x1xf32>
    %2 = vector.broadcast %1 : vector<16x1xf32> to vector<16x64xf32>
    %3 = arith.addf %0, %2 : vector<16x64xf32>
    %c0_3 = arith.constant 0 : index
    %c0_4 = arith.constant 0 : index
    %4 = vector.load %arg4[%c0_3, %c0_4] : memref<16x64xf32, #tpu.memory_space<vmem>>, vector<16x64xf32>
    tpu.vector_store %arg4[%c0_3, %c0_4], %3 {strides = array<i32>} : memref<16x64xf32, #tpu.memory_space<vmem>>, vector<16x64xf32>,
    return
  }
  func.func @transform_0(%arg0: i32, %arg1: i32) -> (i32, i32) {
    %c0_i32 = arith.constant 0 : i32
    %c0_i32_0 = arith.constant 0 : i32
    return %arg0, %c0_i32 : i32, i32
  }
  func.func @transform_1(%arg0: i32, %arg1: i32) -> (i32, i32) {
    %c0_i32 = arith.constant 0 : i32
    return %arg0, %arg1 : i32, i32
  }
  func.func @transform_2(%arg0: i32, %arg1: i32) -> (i32, i32) {
    %c0_i32 = arith.constant 0 : i32
    return %arg0, %arg1 : i32, i32
  }
}

</mosaic_0001>

<llo_original>
// kernel: tpu_custom_call.1
$region0: #{tpu_custom_call.1}
  #allocation0 [shape = 'u32[]', space=smem, size = 0x4, offset = 0x4, fixed_abs, tag = 'smem constant byte address 0x4 - core index']
  #allocation1 [shape = 'u32[144,128]{1,0:T(1,128)}', space=vmem, size = 0x12000, scoped, tag = 'internal scratch']
  %s0 = inlined_call_operand.vmem [shape: f32[16,1], index: 0, kind: input, shape index: {}]
  %s1 = inlined_call_operand.hbm [shape: f32[16,64], index: 1, kind: input, shape index: {}, may-alias: {1,2}]
  %s2 = inlined_call_operand.hbm [shape: f32[16,64], index: 2, kind: output, shape index: {}, may-alias: {1,2}]
  %s3 = sld [smem:[#allocation0]]
  $region22: #{tpu_custom_call.1} parent=0
    _
  %s5 = ssub.s32 1, %s3
  %s6 = scalar_select 0, %s5, %s3
  $region1: #{tpu_custom_call.1} parent=0
    #allocation2 [shape = 'u8[8192]{0}', space=vmem, size = 0x2000, scoped, tag = 'input window, operand 1, single buffered']
    #allocation3 [shape = 's32[1]{0}', space=sflag, size = 0x4, scoped, tag = 'scoped memory for tpu_custom_call.1']
    #allocation4 [shape = 's32[1]{0}', space=sflag, size = 0x4, scoped, tag = 'scoped memory for tpu_custom_call.1']
    #allocation5 [shape = 'u8[8192]{0}', space=vmem, size = 0x2000, scoped, tag = 'output window, operand 0, single buffered']
    %7 = vsyncpa [#allocation3], 0
    %8 = vsyncpa [#allocation4], 0
    // Predicated region
    $region2: #{tpu_custom_call.1} parent=1 // pred_check
      _
    $region3: #{tpu_custom_call.1} parent=1 // pred_check_branch
      %10 = sbr.rel (0) target = $region5
    $region4: #{tpu_custom_call.1} parent=1 // pred_region
      _
    $region5: #{tpu_custom_call.1} parent=1 // pred_fallthru
      _
    // Predicated region
    $region6: #{tpu_custom_call.1} parent=1 // pred_check
      _
    $region7: #{tpu_custom_call.1} parent=1 // pred_check_branch
      %12 = sbr.rel (0) target = $region9
    $region8: #{tpu_custom_call.1} parent=1 // pred_region
      %s14 = ssub.s32 256, 256
      %15 = vsyncadd [#allocation3], %s14
      %s16 = sshll.u32 [#allocation2], 4
      %s17 = int_to_ptr.vmem [resolvable:$true] %s16
      %22 = dma.hbm_to_vmem [thread:$0]  %s1, 256, %s17, [#allocation3], 128, 128, 8
    $region9: #{tpu_custom_call.1} parent=1 // pred_fallthru
      _
    // Predicated region
    $region10: #{tpu_custom_call.1} parent=1 // pred_check
      _
    $region11: #{tpu_custom_call.1} parent=1 // pred_check_branch
      %24 = sbr.rel (0) target = $region13
    $region12: #{tpu_custom_call.1} parent=1 // pred_region
      %25 = dma.done [#allocation3], 256
    $region13: #{tpu_custom_call.1} parent=1 // pred_fallthru
      _
    %v26 = vld [vmem:[#allocation2] sm:$0xff]
    %v27 = vld [vmem:[#allocation2 + $0x8] sm:$0xff]
    %v28 = vld [vmem:[%s0] sm:$0xff]
    %v29 = vld [vmem:[%s0 + $0x8] sm:$0xff]
    %31 = vset.pattern.permute.xlu0 0
    %32 = vperm.xlu0 %31, %v28
    %v33 = vpop.permute.xlu0 %32
    %36 = vset.pattern.permute.xlu0 0
    %37 = vperm.xlu0 %36, %v29
    %v38 = vpop.permute.xlu0 %37
    %v40 = vadd.f32 %v26, %v33
    %v41 = vadd.f32 %v27, %v38
    %vm42 = vcmask 523264
    %43 = vst.msk [vmem:[#allocation5] sm:$0xff] %vm42, %v40
    %44 = vst.msk [vmem:[#allocation5 + $0x8] sm:$0xff] %vm42, %v41
    // Predicated region
    $region14: #{tpu_custom_call.1} parent=1 // pred_check
      _
    $region15: #{tpu_custom_call.1} parent=1 // pred_check_branch
      %46 = sbr.rel (0) target = $region17
    $region16: #{tpu_custom_call.1} parent=1 // pred_region
      %s48 = ssub.s32 256, 256
      %49 = vsyncadd [#allocation4], %s48
      %s50 = sshll.u32 [#allocation5], 4
      %s51 = int_to_ptr.vmem [resolvable:$true] %s50
      %56 = dma.vmem_to_hbm [thread:$0]  %s51, 256, %s2, [#allocation4], 128, 128, 8
    $region17: #{tpu_custom_call.1} parent=1 // pred_fallthru
      _
    // Predicated region
    $region18: #{tpu_custom_call.1} parent=1 // pred_check
      _
    $region19: #{tpu_custom_call.1} parent=1 // pred_check_branch
      %58 = sbr.rel (0) target = $region21
    $region20: #{tpu_custom_call.1} parent=1 // pred_region
      %59 = dma.done [#allocation4], 256
    $region21: #{tpu_custom_call.1} parent=1 // pred_fallthru
      _
    %60 = vsyncpa [#allocation3], 1
    %61 = vsyncpa [#allocation4], 1

</llo_original>
